<compile_context>
chip_gen: v6e
topology: v6e:2x2x1
jax: 0.10.0
libtpu: 0.0.40
codegen_flags: <defaults>
</compile_context>

<pallas_src>
import jax
import jax.numpy as jnp
from jax.experimental import pallas as pl
from jax.experimental.pallas import tpu as pltpu


def _attentive_pooling_kernel(x_ref, w1_ref, b1_ref, w2_ref, bias_ref, out_ref):
    # x_ref:    (Bb, S, E)   activations, storage dtype (f32 / bf16)
    # w1_ref:   (E, H)       fc1 weight, same dtype as x (native MXU matmul)
    # b1_ref:   (1, H)       fc1 bias (f32)
    # w2_ref:   (1, H)       fc2 weight as a row vector (f32)
    # bias_ref: (Bb, S)      additive score bias: b2 on valid slots, -1e9 masked
    # out_ref:  (Bb, E)
    Bb, S, E = x_ref.shape
    H = w1_ref.shape[1]

    x = x_ref[...]                                        # (Bb, S, E)

    # fc1 on the MXU for the whole batch block at once, f32 accumulation.
    x2d = x.reshape(Bb * S, E)
    h = jnp.tanh(
        jnp.dot(x2d, w1_ref[...], preferred_element_type=jnp.float32)
        + b1_ref[...])                                    # (Bb*S, H) f32

    # fc2 (H -> 1) as a VPU multiply + cross-lane reduce; scores stay
    # lane-dense as (Bb, S).
    h3 = h.reshape(Bb, S, H)
    scores = jnp.sum(h3 * w2_ref[...], axis=-1)           # (Bb, S) f32
    scores = scores + bias_ref[...]                       # mask + b2, pre-folded

    # Masked softmax over the sequence (lane) axis.  Exact divide: the
    # approximate EUP reciprocal was the dominant error source (~2.5e-3).
    m = jnp.max(scores, axis=-1, keepdims=True)           # (Bb, 1)
    e = jnp.exp(scores - m)                               # (Bb, S)
    denom = jnp.sum(e, axis=-1, keepdims=True)            # (Bb, 1)
    alpha = e / denom                                     # (Bb, S)

    # Attention-weighted sum over the sequence: (Bb, S, E) -> (Bb, E).
    # alpha is f32, so the product accumulates in f32 regardless of x dtype.
    r = jnp.sum(alpha[..., None] * x, axis=1)
    out_ref[...] = r.astype(out_ref.dtype)


def _vmem_limits():
    """Generation-aware (per-core) VMEM budget for the block working set and
    the scoped vmem limit handed to Mosaic."""
    cap = 64 * 1024 * 1024          # conservative fallback: v7x per-TC VMEM
    try:
        info = pltpu.get_tpu_info()
        cap = int(getattr(info, "vmem_capacity_bytes", cap))
    except Exception:
        pass
    block_budget = max(8 * 1024 * 1024, cap // 3)   # ~21 MiB v7x, ~42 MiB v5e/v6e
    vmem_limit = min((cap * 3) // 4, 128 * 1024 * 1024)
    return int(block_budget), int(vmem_limit)


def _choose_batch_block(B, S, E, H, x_itemsize, budget):
    """Pick Bb = batch rows per grid step against a VMEM budget that counts
    the f32 intermediates, then shape the grid for pipelining / megacore."""
    # Fixed cost: double-buffered w1 block + (tiny) b1 / w2 rows.
    fixed = 2 * E * H * x_itemsize + 4 * H * 4
    per_row = (
        2 * S * E * x_itemsize      # x block, double-buffered
        + 2 * S * 4                 # score-bias block, double-buffered
        + 2 * E * x_itemsize        # output block, double-buffered
        + S * H * 4                 # h = tanh(fc1) in f32
        + S * E * 4                 # alpha[..., None] * x product in f32
        + 4 * S * 4)                # scores / exp / misc f32 rows
    avail = max(budget - fixed, per_row)
    bb = max(1, avail // per_row)
    bb = int(min(bb, B))

    # Grid shaping: aim for >= 4 steps (2 per TensorCore on megacore parts,
    # keeping double-buffering per core) when the batch allows it.
    if B >= 4:
        bb = min(bb, -(-B // 4))
    elif B >= 2:
        bb = min(bb, -(-B // 2))

    if bb < B:
        # Keep the (Bb, S) / (Bb, E) BlockSpecs tile-legal: the second-to-last
        # block dim must be a multiple of 8 unless it equals the full dim.
        bb = -(-bb // 8) * 8
        bb = min(bb, B)
    return max(1, int(bb))


def attentive_pooling(x, w1, b1, w2, b2, mask=None):
    """x: (B, S, E); w1: (E, H); b1: (H,); w2: (H, 1); b2: (1,);
    mask: (B, S) or None.  Returns (B, E) in x.dtype."""
    B, S, E = x.shape
    H = w1.shape[1]

    # Fold mask and the fc2 bias b2 into one additive, lane-dense score bias.
    # Masked slots get -1e9 (same as the reference's masked_fill).
    b2s = jnp.asarray(b2, jnp.float32).reshape(())
    if mask is None:
        bias = jnp.full((B, S), b2s, dtype=jnp.float32)
    else:
        bias = jnp.where(mask == 0, jnp.float32(-1e9), b2s).astype(jnp.float32)

    block_budget, vmem_limit = _vmem_limits()
    Bb = _choose_batch_block(B, S, E, H, x.dtype.itemsize, block_budget)
    G = -(-B // Bb)

    w1_k = w1.astype(x.dtype)                       # native-dtype MXU operand
    b1_2d = b1.reshape(1, H).astype(jnp.float32)
    w2_row = w2.reshape(1, H).astype(jnp.float32)

    out = pl.pallas_call(
        _attentive_pooling_kernel,
        out_shape=jax.ShapeDtypeStruct((B, E), x.dtype),
        grid_spec=pltpu.PrefetchScalarGridSpec(
            num_scalar_prefetch=0,
            grid=(G,),
            in_specs=[
                pl.BlockSpec((Bb, S, E), lambda g: (g, 0, 0)),   # x
                pl.BlockSpec((E, H), lambda g: (0, 0)),          # w1
                pl.BlockSpec((1, H), lambda g: (0, 0)),          # b1
                pl.BlockSpec((1, H), lambda g: (0, 0)),          # w2 row
                pl.BlockSpec((Bb, S), lambda g: (g, 0)),         # score bias
            ],
            out_specs=pl.BlockSpec((Bb, E), lambda g: (g, 0)),
        ),
        compiler_params=pltpu.CompilerParams(
            dimension_semantics=("parallel",),
            vmem_limit_bytes=vmem_limit,
        ),
    )(x, w1_k, b1_2d, w2_row, bias)

    return out


def reference_attentive_pooling(x, w1, b1, w2, b2, mask=None):
    """Pure-JAX reference mirroring the PyTorch forward (f32 math)."""
    xf = x.astype(jnp.float32)
    a = jnp.tanh(xf @ w1.astype(jnp.float32) + b1) @ w2 + b2     # (B, S, 1)
    if mask is not None:
        a = jnp.where(mask[..., None] == 0, -1e9, a)
    alpha = jax.nn.softmax(a, axis=1)                            # (B, S, 1)
    r = jnp.einsum('bsi,bse->be', alpha, xf)                     # (B, E)
    return r


def _make_case(key, B, S, E, H, dtype=jnp.float32):
    k_x, k_w1, k_b1, k_w2, k_b2, k_m = jax.random.split(key, 6)
    x = jax.random.normal(k_x, (B, S, E), dtype=jnp.float32).astype(dtype)
    bound1 = 1.0 / (E ** 0.5)
    w1 = jax.random.uniform(k_w1, (E, H), jnp.float32, -bound1, bound1)
    b1 = jax.random.uniform(k_b1, (H,), jnp.float32, -bound1, bound1)
    bound2 = 1.0 / (H ** 0.5)
    w2 = jax.random.uniform(k_w2, (H, 1), jnp.float32, -bound2, bound2)
    b2 = jax.random.uniform(k_b2, (1,), jnp.float32, -bound2, bound2)
    mask = (jax.random.uniform(k_m, (B, S)) > 0.3).astype(jnp.float32)
    mask = mask.at[:, 0].set(1.0)  # at least one valid position per row
    return x, w1, b1, w2, b2, mask


if __name__ == "__main__":
    key = jax.random.PRNGKey(0)

    # Small config matching the module's (n_batch, n_seq, emb_dim) convention.
    x, w1, b1, w2, b2, mask = _make_case(key, B=2, S=8, E=32, H=32)
    r = jax.block_until_ready(attentive_pooling(x, w1, b1, w2, b2, mask))
    r_ref = reference_attentive_pooling(x, w1, b1, w2, b2, mask)
    assert r.shape == (2, 32)
    err = float(jnp.max(jnp.abs(r.astype(jnp.float32) - r_ref)))
    assert err < 1e-3, f"max abs err {err}"

    # Multi-block config with a ragged last batch block (no host-side pads).
    x2, w1b, b1b, w2b, b2b, mask2 = _make_case(
        jax.random.fold_in(key, 1), B=30, S=16, E=32, H=32)
    r2 = jax.block_until_ready(attentive_pooling(x2, w1b, b1b, w2b, b2b, mask2))
    r2_ref = reference_attentive_pooling(x2, w1b, b1b, w2b, b2b, mask2)
    assert r2.shape == (30, 32)
    err2 = float(jnp.max(jnp.abs(r2.astype(jnp.float32) - r2_ref)))
    assert err2 < 1e-3, f"max abs err {err2}"

    # bf16 streaming path: lane-dense E, native bf16 MXU fc1 matmul with f32
    # accumulation.  Looser tolerance for bf16 product rounding.
    x3, w1c, b1c, w2c, b2c, mask3 = _make_case(
        jax.random.fold_in(key, 2), B=16, S=16, E=128, H=64, dtype=jnp.bfloat16)
    r3 = jax.block_until_ready(attentive_pooling(x3, w1c, b1c, w2c, b2c, mask3))
    r3_ref = reference_attentive_pooling(x3, w1c, b1c, w2c, b2c, mask3)
    assert r3.shape == (16, 128)
    err3 = float(jnp.max(jnp.abs(r3.astype(jnp.float32) - r3_ref)))
    assert err3 < 5e-2, f"max abs err {err3}"

    print("KERNEL_OK")
</pallas_src>

<mosaic_0001>
module attributes {stable_mosaic.version = 11 : i64} {
  func.func @_attentive_pooling_kernel(%arg0: i32, %arg1: memref<2x8x32xf32, #tpu.memory_space<vmem>>, %arg2: memref<32x32xf32, #tpu.memory_space<vmem>>, %arg3: memref<1x32xf32, #tpu.memory_space<vmem>>, %arg4: memref<1x32xf32, #tpu.memory_space<vmem>>, %arg5: memref<2x8xf32, #tpu.memory_space<vmem>>, %arg6: memref<2x32xf32, #tpu.memory_space<vmem>>) attributes {dimension_semantics = [#tpu.dimension_semantics<parallel>], iteration_bounds = array<i64: 1>, scalar_prefetch = 0 : i64, scratch_operands = 0 : i64, tpu.core_type = #tpu.core_type<tc>, window_params = [{transform_indices = @transform_0, window_bounds = array<i64: 2, 8, 32>}, {pipeline_mode = #tpu.pipeline_mode<synchronous>, transform_indices = @transform_1, window_bounds = array<i64: 32, 32>}, {pipeline_mode = #tpu.pipeline_mode<synchronous>, transform_indices = @transform_2, window_bounds = array<i64: 1, 32>}, {pipeline_mode = #tpu.pipeline_mode<synchronous>, transform_indices = @transform_3, window_bounds = array<i64: 1, 32>}, {transform_indices = @transform_4, window_bounds = array<i64: 2, 8>}, {transform_indices = @transform_5, window_bounds = array<i64: 2, 32>}]} {
    %c0 = arith.constant 0 : index
    %c0_0 = arith.constant 0 : index
    %c0_1 = arith.constant 0 : index
    %0 = vector.load %arg1[%c0, %c0_0, %c0_1] : memref<2x8x32xf32, #tpu.memory_space<vmem>>, vector<2x8x32xf32>
    %1 = vector.shape_cast %0 : vector<2x8x32xf32> to vector<16x32xf32>
    %c0_2 = arith.constant 0 : index
    %c0_3 = arith.constant 0 : index
    %2 = vector.load %arg2[%c0_2, %c0_3] : memref<32x32xf32, #tpu.memory_space<vmem>>, vector<32x32xf32>
    %cst = arith.constant dense<0.000000e+00> : vector<16x32xf32>
    %3 = tpu.matmul %1, %2, %cst {dimension_numbers = #tpu.dot_dimension_numbers<[1], [0], [0], [1], [0, 0, 1, 1], [], []>} : vector<16x32xf32>, vector<32x32xf32>, vector<16x32xf32> -> vector<16x32xf32>
    %c0_4 = arith.constant 0 : index
    %c0_5 = arith.constant 0 : index
    %4 = vector.load %arg3[%c0_4, %c0_5] : memref<1x32xf32, #tpu.memory_space<vmem>>, vector<1x32xf32>
    %5 = vector.broadcast %4 : vector<1x32xf32> to vector<16x32xf32>
    %6 = arith.addf %3, %5 : vector<16x32xf32>
    %7 = math.tanh %6 : vector<16x32xf32>
    %8 = vector.shape_cast %7 : vector<16x32xf32> to vector<2x8x32xf32>
    %c0_6 = arith.constant 0 : index
    %c0_7 = arith.constant 0 : index
    %9 = vector.load %arg4[%c0_6, %c0_7] : memref<1x32xf32, #tpu.memory_space<vmem>>, vector<1x32xf32>
    %10 = vector.shape_cast %9 : vector<1x32xf32> to vector<1x1x32xf32>
    %11 = vector.broadcast %10 : vector<1x1x32xf32> to vector<2x8x32xf32>
    %12 = arith.mulf %8, %11 : vector<2x8x32xf32>
    %cst_8 = arith.constant dense<0.000000e+00> : vector<2x8xf32>
    %13 = vector.multi_reduction <add>, %12, %cst_8 [2] : vector<2x8x32xf32> to vector<2x8xf32>
    %c0_9 = arith.constant 0 : index
    %c0_10 = arith.constant 0 : index
    %14 = vector.load %arg5[%c0_9, %c0_10] : memref<2x8xf32, #tpu.memory_space<vmem>>, vector<2x8xf32>
    %15 = arith.addf %13, %14 : vector<2x8xf32>
    %cst_11 = arith.constant dense<0xFF800000> : vector<2xf32>
    %16 = vector.multi_reduction <maximumf>, %15, %cst_11 [1] : vector<2x8xf32> to vector<2xf32>
    %17 = vector.shape_cast %16 : vector<2xf32> to vector<2x1xf32>
    %18 = vector.broadcast %17 : vector<2x1xf32> to vector<2x8xf32>
    %19 = arith.subf %15, %18 : vector<2x8xf32>
    %20 = math.exp %19 : vector<2x8xf32>
    %cst_12 = arith.constant dense<0.000000e+00> : vector<2xf32>
    %21 = vector.multi_reduction <add>, %20, %cst_12 [1] : vector<2x8xf32> to vector<2xf32>
    %22 = vector.shape_cast %21 : vector<2xf32> to vector<2x1xf32>
    %23 = vector.broadcast %22 : vector<2x1xf32> to vector<2x8xf32>
    %24 = arith.divf %20, %23 : vector<2x8xf32>
    %25 = vector.shape_cast %24 : vector<2x8xf32> to vector<2x8x1xf32>
    %26 = vector.broadcast %25 : vector<2x8x1xf32> to vector<2x8x32xf32>
    %27 = arith.mulf %26, %0 : vector<2x8x32xf32>
    %cst_13 = arith.constant dense<0.000000e+00> : vector<2x32xf32>
    %28 = vector.multi_reduction <add>, %27, %cst_13 [1] : vector<2x8x32xf32> to vector<2x32xf32>
    %c0_14 = arith.constant 0 : index
    %c0_15 = arith.constant 0 : index
    %29 = vector.load %arg6[%c0_14, %c0_15] : memref<2x32xf32, #tpu.memory_space<vmem>>, vector<2x32xf32>
    tpu.vector_store %arg6[%c0_14, %c0_15], %28 {strides = array<i32>} : memref<2x32xf32, #tpu.memory_space<vmem>>, vector<2x32xf32>,
    return
  }
  func.func @transform_0(%arg0: i32) -> (i32, i32, i32) {
    %c0_i32 = arith.constant 0 : i32
    %c0_i32_0 = arith.constant 0 : i32
    %c0_i32_1 = arith.constant 0 : i32
    return %arg0, %c0_i32, %c0_i32_0 : i32, i32, i32
  }
  func.func @transform_1(%arg0: i32) -> (i32, i32) {
    %c0_i32 = arith.constant 0 : i32
    %c0_i32_0 = arith.constant 0 : i32
    %c0_i32_1 = arith.constant 0 : i32
    return %c0_i32, %c0_i32_0 : i32, i32
  }
  func.func @transform_2(%arg0: i32) -> (i32, i32) {
    %c0_i32 = arith.constant 0 : i32
    %c0_i32_0 = arith.constant 0 : i32
    %c0_i32_1 = arith.constant 0 : i32
    return %c0_i32, %c0_i32_0 : i32, i32
  }
  func.func @transform_3(%arg0: i32) -> (i32, i32) {
    %c0_i32 = arith.constant 0 : i32
    %c0_i32_0 = arith.constant 0 : i32
    %c0_i32_1 = arith.constant 0 : i32
    return %c0_i32, %c0_i32_0 : i32, i32
  }
  func.func @transform_4(%arg0: i32) -> (i32, i32) {
    %c0_i32 = arith.constant 0 : i32
    %c0_i32_0 = arith.constant 0 : i32
    return %arg0, %c0_i32 : i32, i32
  }
  func.func @transform_5(%arg0: i32) -> (i32, i32) {
    %c0_i32 = arith.constant 0 : i32
    %c0_i32_0 = arith.constant 0 : i32
    return %arg0, %c0_i32 : i32, i32
  }
}

</mosaic_0001>

<llo_original>
// kernel: tpu_custom_call.1
$region0: #{tpu_custom_call.1}
  #allocation0 [shape = 'u32[]', space=smem, size = 0x4, offset = 0x4, fixed_abs, tag = 'smem constant byte address 0x4 - core index']
  #allocation1 [shape = 'u32[144,128]{1,0:T(1,128)}', space=vmem, size = 0x12000, scoped, tag = 'internal scratch']
  %s0 = inlined_call_operand.hbm [shape: f32[2,8,32], index: 0, kind: input, shape index: {}]
  %s1 = inlined_call_operand.hbm [shape: f32[32,32], index: 1, kind: input, shape index: {}]
  %s2 = inlined_call_operand.vmem [shape: f32[1,32], index: 2, kind: input, shape index: {}]
  %s3 = inlined_call_operand.vmem [shape: f32[1,32], index: 3, kind: input, shape index: {}]
  %s4 = inlined_call_operand.vmem [shape: f32[2,8], index: 4, kind: input, shape index: {}]
  %s5 = inlined_call_operand.hbm [shape: f32[2,32], index: 5, kind: output, shape index: {}]
  %s6 = sld [smem:[#allocation0]]
  $region38: #{tpu_custom_call.1} parent=0
    _
  %s8 = ssub.s32 1, %s6
  %s9 = scalar_select 0, %s8, %s6
  $region1: #{tpu_custom_call.1} parent=0
    #allocation2 [shape = 'u8[8192]{0}', space=vmem, size = 0x2000, scoped, tag = 'input window, operand 0, single buffered']
    #allocation3 [shape = 's32[1]{0}', space=sflag, size = 0x4, scoped, tag = 'scoped memory for tpu_custom_call.1']
    #allocation4 [shape = 's32[1]{0}', space=sflag, size = 0x4, scoped, tag = 'scoped memory for tpu_custom_call.1']
    #allocation5 [shape = 'u8[16384]{0}', space=vmem, size = 0x4000, scoped, tag = 'input window, operand 1, single buffered']
    #allocation6 [shape = 's32[1]{0}', space=sflag, size = 0x4, scoped, tag = 'scoped memory for tpu_custom_call.1']
    #allocation7 [shape = 'u8[1024]{0}', space=vmem, size = 0x400, scoped, tag = 'output window, operand 0, single buffered']
    %10 = vsyncpa [#allocation3], 0
    %11 = vsyncpa [#allocation6], 0
    %12 = vsyncpa [#allocation4], 0
    // Predicated region
    $region2: #{tpu_custom_call.1} parent=1 // pred_check
      _
    $region3: #{tpu_custom_call.1} parent=1 // pred_check_branch
      %14 = sbr.rel (0) target = $region5
    $region4: #{tpu_custom_call.1} parent=1 // pred_region
      %s16 = ssub.s32 256, 256
      %17 = vsyncadd [#allocation3], %s16
      %s18 = sshll.u32 [#allocation2], 4
      %s19 = int_to_ptr.vmem [resolvable:$true] %s18
      %24 = dma.hbm_to_vmem [thread:$0]  %s0, 256, %s19, [#allocation3], 128, 128, 8
    $region5: #{tpu_custom_call.1} parent=1 // pred_fallthru
      _
    // Predicated region
    $region6: #{tpu_custom_call.1} parent=1 // pred_check
      _
    $region7: #{tpu_custom_call.1} parent=1 // pred_check_branch
      %26 = sbr.rel (0) target = $region9
    $region8: #{tpu_custom_call.1} parent=1 // pred_region
      %s28 = ssub.s32 512, 512
      %29 = vsyncadd [#allocation6], %s28
      %s30 = sshll.u32 [#allocation5], 4
      %s31 = int_to_ptr.vmem [resolvable:$true] %s30
      %36 = dma.hbm_to_vmem [thread:$0]  %s1, 512, %s31, [#allocation6], 128, 128, 8
    $region9: #{tpu_custom_call.1} parent=1 // pred_fallthru
      _
    // Predicated region
    $region10: #{tpu_custom_call.1} parent=1 // pred_check
      _
    $region11: #{tpu_custom_call.1} parent=1 // pred_check_branch
      %38 = sbr.rel (0) target = $region13
    $region12: #{tpu_custom_call.1} parent=1 // pred_region
      _
    $region13: #{tpu_custom_call.1} parent=1 // pred_fallthru
      _
    // Predicated region
    $region14: #{tpu_custom_call.1} parent=1 // pred_check
      _
    $region15: #{tpu_custom_call.1} parent=1 // pred_check_branch
      %40 = sbr.rel (0) target = $region17
    $region16: #{tpu_custom_call.1} parent=1 // pred_region
      _
    $region17: #{tpu_custom_call.1} parent=1 // pred_fallthru
      _
    // Predicated region
    $region18: #{tpu_custom_call.1} parent=1 // pred_check
      _
    $region19: #{tpu_custom_call.1} parent=1 // pred_check_branch
      %42 = sbr.rel (0) target = $region21
    $region20: #{tpu_custom_call.1} parent=1 // pred_region
      _
    $region21: #{tpu_custom_call.1} parent=1 // pred_fallthru
      _
    // Predicated region
    $region22: #{tpu_custom_call.1} parent=1 // pred_check
      _
    $region23: #{tpu_custom_call.1} parent=1 // pred_check_branch
      %44 = sbr.rel (0) target = $region25
    $region24: #{tpu_custom_call.1} parent=1 // pred_region
      %45 = dma.done [#allocation3], 256
    $region25: #{tpu_custom_call.1} parent=1 // pred_fallthru
      _
    // Predicated region
    $region26: #{tpu_custom_call.1} parent=1 // pred_check
      _
    $region27: #{tpu_custom_call.1} parent=1 // pred_check_branch
      %47 = sbr.rel (0) target = $region29
    $region28: #{tpu_custom_call.1} parent=1 // pred_region
      %48 = dma.done [#allocation6], 512
    $region29: #{tpu_custom_call.1} parent=1 // pred_fallthru
      _
    %v49 = vld [vmem:[#allocation2] sm:$0xff]
    %v50 = vld [vmem:[#allocation2 + $0x8] sm:$0xff]
    %v51 = vld [vmem:[#allocation5] sm:$0xff]
    %v52 = vld [vmem:[#allocation5 + $0x8] sm:$0xff]
    %v53 = vld [vmem:[#allocation5 + $0x10] sm:$0xff]
    %v54 = vld [vmem:[#allocation5 + $0x18] sm:$0xff]
    %v55 = vld [vmem:[%s2] sm:$0x1]
    %v57 = vlaneseq
    %v58 = vshrl.u32 %v57, 7
    %v59 = vsub.s32 0, %v58
    %v60 = vrot.slane %v55, %v59
    %vm62 = vcmask 261120
    %v64 = vsel %vm62, %v49, 0
    %v67 = vsel %vm62, %v50, 0
    %69 = vmatprep.subr.mxu0 0.0
    %70 = vmatpush1.msra.mxu0 0.0
    %71 = vmatprep.subr.mxu0 0.0
    %72 = vmatpush1.msra.mxu0 0.0
    %73 = vmatprep.subr.mxu0 0.0
    %74 = vmatpush1.msra.mxu0 0.0
    %75 = vmatprep.subr.mxu0 0.0
    %76 = vmatpush1.msra.mxu0 0.0
    %77 = vmatprep.subr.mxu0 0.0
    %78 = vmatpush1.msra.mxu0 0.0
    %79 = vmatprep.subr.mxu0 0.0
    %80 = vmatpush1.msra.mxu0 0.0
    %81 = vmatprep.subr.mxu0 0.0
    %82 = vmatpush1.msra.mxu0 0.0
    %83 = vmatprep.subr.mxu0 0.0
    %84 = vmatpush1.msra.mxu0 0.0
    %85 = vmatprep.subr.mxu0 0.0
    %86 = vmatpush1.msra.mxu0 0.0
    %87 = vmatprep.subr.mxu0 0.0
    %88 = vmatpush1.msra.mxu0 0.0
    %89 = vmatprep.subr.mxu0 0.0
    %90 = vmatpush1.msra.mxu0 0.0
    %91 = vmatprep.subr.mxu0 0.0
    %92 = vmatpush1.msra.mxu0 0.0
    %93 = vmatprep.subr.mxu0 0.0
    %94 = vmatpush1.msra.mxu0 %v54
    %95 = vmatprep.subr.mxu0 0.0
    %96 = vmatpush1.msra.mxu0 %v53
    %97 = vmatprep.subr.mxu0 0.0
    %98 = vmatpush1.msra.mxu0 %v52
    %99 = vmatprep.subr.mxu0 0.0
    %100 = vmatpush1.msra.mxu0 %v51
    %101 = vmatprep.subr.mxu0 0.0
    %102 = vmatpush2.msra.mxu0 0.0
    %103 = vmatprep.subr.mxu0 0.0
    %104 = vmatpush2.msra.mxu0 0.0
    %105 = vmatprep.subr.mxu0 0.0
    %106 = vmatpush2.msra.mxu0 0.0
    %107 = vmatprep.subr.mxu0 0.0
    %108 = vmatpush2.msra.mxu0 0.0
    %109 = vmatprep.subr.mxu0 0.0
    %110 = vmatpush2.msra.mxu0 0.0
    %111 = vmatprep.subr.mxu0 0.0
    %112 = vmatpush2.msra.mxu0 0.0
    %113 = vmatprep.subr.mxu0 0.0
    %114 = vmatpush2.msra.mxu0 0.0
    %115 = vmatprep.subr.mxu0 0.0
    %116 = vmatpush2.msra.mxu0 0.0
    %117 = vmatprep.subr.mxu0 0.0
    %118 = vmatpush2.msra.mxu0 0.0
    %119 = vmatprep.subr.mxu0 0.0
    %120 = vmatpush2.msra.mxu0 0.0
    %121 = vmatprep.subr.mxu0 0.0
    %122 = vmatpush2.msra.mxu0 0.0
    %123 = vmatprep.subr.mxu0 0.0
    %124 = vmatpush2.msra.mxu0 0.0
    %125 = vmatprep.subr.mxu0 0.0
    %126 = vmatpush2.msra.mxu0 0.0
    %127 = vmatprep.subr.mxu0 0.0
    %128 = vmatpush2.msra.mxu0 0.0
    %129 = vmatprep.subr.mxu0 0.0
    %130 = vmatpush2.msra.mxu0 0.0
    %131 = vmatprep.subr.mxu0 0.0
    %132 = vmatpush2.msra.mxu0 0.0
    %133 = vmatprep.mubr.f32.mxu0 0.0
    %134 = vmatmul.mubr.f32.gmra.mxu0 %v64
    %v135 = vpop.f32.mrf.mxu0
    %v136 = vadd.f32 %v60, %v135
    %v137 = vpop.f32.mrf.mxu0
    %138 = vmatprep.mubr.f32.mxu0 0.0
    %139 = vmatmul.mubr.f32.gmra.mxu0 %v67
    %v140 = vpop.f32.mrf.mxu0
    %v141 = vadd.f32 %v60, %v140
    %v142 = vpop.f32.mrf.mxu0
    %143 = vdwg.mxu0
    %v144 = vtanh.pop %v136
    %v145 = vtanh.pop %v141
    %v146 = vld [vmem:[%s3] sm:$0x1]
    %v148 = vlaneseq
    %v149 = vshrl.u32 %v148, 7
    %v150 = vsub.s32 0, %v149
    %v151 = vrot.slane %v146, %v150
    %v153 = vmul.f32 %v144, %v151
    %v154 = vmul.f32 %v145, %v151
    %v155 = vsel %vm62, %v153, 0.0
    %156 = vadd.xlane.f32.xlu0 %v155
    %v157 = vpop.xlane.xlu0 %156
    %v158 = vsel %vm62, %v154, 0.0
    %159 = vadd.xlane.f32.xlu0 %v158
    %v160 = vpop.xlane.xlu0 %159
    %v161 = vld [vmem:[%s4] sm:$0x3]
    %v163 = vlaneseq
    %v164 = vshrl.u32 %v163, 7
    %v165 = vsub.s32 0, %v164
    %v166 = vrot.slane %v161, %v165
    %168 = vbcast.lane.b32.xlu0 %v166, 256
    %v169 = vpop.permute.xlu0 %168
    %v170 = vlaneseq
    %v171 = vshrl.u32 %v170, 7
    %v172 = vsub.s32 1, %v171
    %v173 = vrot.slane %v161, %v172
    %175 = vbcast.lane.b32.xlu0 %v173, 256
    %v176 = vpop.permute.xlu0 %175
    %v179 = vadd.f32 %v157, %v169
    %v180 = vadd.f32 %v160, %v176
    %183 = vset.pattern.permute.xlu0 0
    %184 = vperm.xlu0 %183, %v179
    %v185 = vpop.permute.xlu0 %184
    %186 = vset.pattern.permute.xlu0 0
    %187 = vperm.xlu0 %186, %v180
    %v188 = vpop.permute.xlu0 %187
    %v189 = vlaneseq
    %v190 = vand.u32 %v189, 127
    %v191 = vlaneseq
    %v192 = vshrl.u32 %v191, 7
    %v193 = vsub.s32 %v190, %v192
    %v194 = vrot.slane %v185, %v193
    %v195 = vlaneseq
    %v196 = vshrl.u32 %v195, 7
    %v197 = vsub.s32 %v190, %v196
    %v198 = vrot.slane %v188, %v197
    %vm199 = vcmask 1041409
    %v200 = vsel %vm199, %v198, %v194
    %vm202 = vcmask 58368
    %v203 = vsel %vm202, %v200, -inf
    %204 = vmax.xlane.f32.xlu0 %v203
    %v205 = vpop.xlane.xlu0 %204
    %v207 = vlaneseq
    %v208 = vshrl.u32 %v207, 7
    %v209 = vsub.s32 0, %v208
    %v210 = vrot.slane %v205, %v209
    %v211 = vlaneseq
    %v212 = vshrl.u32 %v211, 7
    %v213 = vsub.s32 1, %v212
    %v214 = vrot.slane %v205, %v213
    %v217 = vsub.f32 %v179, %v210
    %v218 = vsub.f32 %v180, %v214
    %v219 = vmul.f32 %v217, 1.442695
    %v220 = vpow.pop %v219
    %v221 = vmul.f32 %v218, 1.442695
    %v222 = vpow.pop %v221
    %225 = vset.pattern.permute.xlu0 0
    %226 = vperm.xlu0 %225, %v220
    %v227 = vpop.permute.xlu0 %226
    %228 = vset.pattern.permute.xlu0 0
    %229 = vperm.xlu0 %228, %v222
    %v230 = vpop.permute.xlu0 %229
    %v231 = vlaneseq
    %v232 = vshrl.u32 %v231, 7
    %v233 = vsub.s32 %v190, %v232
    %v234 = vrot.slane %v227, %v233
    %v235 = vlaneseq
    %v236 = vshrl.u32 %v235, 7
    %v237 = vsub.s32 %v190, %v236
    %v238 = vrot.slane %v230, %v237
    %v239 = vsel %vm199, %v238, %v234
    %v241 = vsel %vm202, %v239, 0.0
    %242 = vadd.xlane.f32.xlu0 %v241
    %v243 = vpop.xlane.xlu0 %242
    %v245 = vlaneseq
    %v246 = vshrl.u32 %v245, 7
    %v247 = vsub.s32 0, %v246
    %v248 = vrot.slane %v243, %v247
    %v249 = vlaneseq
    %v250 = vshrl.u32 %v249, 7
    %v251 = vsub.s32 1, %v250
    %v252 = vrot.slane %v243, %v251
    %v255 = vrcp.pop %v248
    %v256 = vmul.f32 %v220, %v255
    %v257 = vrcp.pop %v252
    %v258 = vmul.f32 %v222, %v257
    %260 = vset.pattern.permute.xlu0 0
    %261 = vperm.xlu0 %260, %v256
    %v262 = vpop.permute.xlu0 %261
    %265 = vset.pattern.permute.xlu0 0
    %266 = vperm.xlu0 %265, %v258
    %v267 = vpop.permute.xlu0 %266
    %v269 = vmul.f32 %v262, %v49
    %v270 = vmul.f32 %v267, %v50
    %v271 = vsel %vm62, %v269, 0.0
    %v272 = vrot.slane %v271, 4
    %v273 = vadd.f32 %v271, %v272
    %v274 = vrot.slane %v273, 2
    %v275 = vadd.f32 %v273, %v274
    %v276 = vrot.slane %v275, 1
    %v277 = vadd.f32 %v275, %v276
    %v278 = vsel %vm62, %v270, 0.0
    %v279 = vrot.slane %v278, 4
    %v280 = vadd.f32 %v278, %v279
    %v281 = vrot.slane %v280, 2
    %v282 = vadd.f32 %v280, %v281
    %v283 = vrot.slane %v282, 1
    %v284 = vadd.f32 %v282, %v283
    %v287 = vsel %vm199, %v284, %v277
    %vm289 = vcmask 254976
    %290 = vst.msk [vmem:[#allocation7] sm:$0x3] %vm289, %v287
    // Predicated region
    $region30: #{tpu_custom_call.1} parent=1 // pred_check
      _
    $region31: #{tpu_custom_call.1} parent=1 // pred_check_branch
      %292 = sbr.rel (0) target = $region33
    $region32: #{tpu_custom_call.1} parent=1 // pred_region
      %s294 = ssub.s32 32, 32
      %295 = vsyncadd [#allocation4], %s294
      %s297 = sshll.u32 [#allocation7], 4
      %s298 = int_to_ptr.vmem [resolvable:$true] %s297
      %300 = dma.vmem_to_hbm [thread:$0]  %s298, 32, %s5, [#allocation4]
    $region33: #{tpu_custom_call.1} parent=1 // pred_fallthru
      _
    // Predicated region
    $region34: #{tpu_custom_call.1} parent=1 // pred_check
      _
    $region35: #{tpu_custom_call.1} parent=1 // pred_check_branch
      %302 = sbr.rel (0) target = $region37
    $region36: #{tpu_custom_call.1} parent=1 // pred_region
      %303 = dma.done [#allocation4], 32
    $region37: #{tpu_custom_call.1} parent=1 // pred_fallthru
      _
    %304 = vsyncpa [#allocation3], 1
    %305 = vsyncpa [#allocation6], 1
    %306 = vsyncpa [#allocation4], 1

</llo_original>
